<compile_context>
chip_gen: v6e
topology: v6e:2x2x1
jax: 0.10.0
libtpu: 0.0.40
codegen_flags: <defaults>
</compile_context>

<pallas_src>
import jax
import jax.numpy as jnp
from jax.experimental import pallas as pl
from jax.experimental.pallas import tpu as pltpu


def _round_up(a, b):
    return (a + b - 1) // b * b


def _dae_gemm_kernel(xT_ref, wT_ref, b_ref, o_ref):
    """One lane-tile of o^T = relu(W @ X^T + b).

    xT_ref : (K, TILE_NM)    bf16   im2col patches (taps major, cin minor rows)
    wT_ref : (Cout, K)       bf16   conv weights, resident across the grid
    b_ref  : (Cout, 1)       f32    bias, added on the f32 accumulator
    o_ref  : (Cout, TILE_NM) xdtype lane-dense output slab
    """
    acc = jnp.dot(wT_ref[...], xT_ref[...], preferred_element_type=jnp.float32)
    acc = acc + b_ref[...]                    # f32 epilogue bias-add (VPU)
    o_ref[...] = jnp.maximum(acc, 0.0).astype(o_ref.dtype)


def dae_forward(x_nchw, weight, bias, noise_nchw, *, stride):
    """y = relu(conv2d(x * (noise > -0.1), weight, bias, stride, padding=1))."""
    n, cin, h, w = x_nchw.shape
    cout = weight.shape[0]
    ho = (h + 2 - 3) // stride + 1
    wo = (w + 2 - 3) // stride + 1
    m = ho * wo
    nm = n * m
    k = 9 * cin
    out_dtype = x_nchw.dtype

    # --- 1x-traffic passes BEFORE the 9x im2col expansion -------------------
    keep = (noise_nchw > -0.1).astype(x_nchw.dtype)
    x_bf = (x_nchw * keep).astype(jnp.bfloat16)          # mask + bf16 at 1x
    x_cf = jnp.transpose(x_bf, (1, 0, 2, 3))             # (Cin, N, H, W)
    x_pad = jnp.pad(x_cf, ((0, 0), (0, 0), (1, 1), (1, 1)))

    # --- im2col directly in (K, NM) layout: tap-major, cin-minor rows,
    #     (n, oy, ox) flattened on lanes -> no post-expansion transpose/cast.
    taps = []
    for kh in range(3):
        for kw in range(3):
            taps.append(
                x_pad[:, :, kh:kh + (ho - 1) * stride + 1:stride,
                            kw:kw + (wo - 1) * stride + 1:stride])
    xT = jnp.stack(taps, axis=0).reshape(k, nm)          # (9*Cin, N*Ho*Wo) bf16

    # Weight reordered to match the tap/cin row order of xT. K stays 36; for
    # large Cin, pad K to a multiple of 16 (bf16 sublane packing) if profiling
    # shows relayout cost on load.
    wT = jnp.transpose(weight, (0, 2, 3, 1)).reshape(cout, k).astype(jnp.bfloat16)
    b2d = bias.reshape(cout, 1).astype(jnp.float32)

    # --- lane tiling of the flattened (batch x spatial) axis -----------------
    LANE = 128
    TILE_CAP = 8192   # xT block ~0.6 MiB + out block ~0.25 MiB, x2 buffers
    nm_128 = _round_up(nm, LANE)
    if nm_128 <= LANE:
        tile_nm = nm_128                                  # toy shape: 1 block
    elif nm_128 <= 2 * TILE_CAP:
        # >= 2 grid steps so "parallel" can shard across v7x's two TensorCores.
        tile_nm = max(LANE, (nm_128 // 2) // LANE * LANE)
    else:
        tile_nm = TILE_CAP
    nm_pad = _round_up(nm, tile_nm)
    if nm_pad != nm:
        # Zero-padded columns produce relu(bias) in the pad region; they are
        # sliced off after the kernel, so this is harmless.
        xT = jnp.pad(xT, ((0, 0), (0, nm_pad - nm)))
    grid = (nm_pad // tile_nm,)

    # Explicit VMEM budget (double-buffered xT + out blocks), safe on all of
    # v5e/v6e (128 MiB) and v7x (64 MiB physical / 32 MiB default scoped).
    itemsize_out = jnp.dtype(out_dtype).itemsize
    xT_block_bytes = k * tile_nm * 2
    out_block_bytes = cout * tile_nm * itemsize_out
    vmem_limit = min(64 * 1024 * 1024,
                     max(16 * 1024 * 1024,
                         8 * (xT_block_bytes + out_block_bytes)))

    flops = 2 * cout * k * nm_pad
    bytes_accessed = (xT.size * 2 + wT.size * 2 + b2d.size * 4
                      + cout * nm_pad * itemsize_out)

    out = pl.pallas_call(
        _dae_gemm_kernel,
        out_shape=jax.ShapeDtypeStruct((cout, nm_pad), out_dtype),
        grid_spec=pltpu.PrefetchScalarGridSpec(
            num_scalar_prefetch=0,
            grid=grid,
            in_specs=[
                pl.BlockSpec((k, tile_nm), lambda i: (0, i)),
                pl.BlockSpec((cout, k), lambda i: (0, 0)),   # resident weights
                pl.BlockSpec((cout, 1), lambda i: (0, 0)),   # resident f32 bias
            ],
            out_specs=pl.BlockSpec((cout, tile_nm), lambda i: (0, i)),
        ),
        compiler_params=pltpu.CompilerParams(
            dimension_semantics=("parallel",),
            vmem_limit_bytes=vmem_limit),
        cost_estimate=pl.CostEstimate(
            flops=flops, transcendentals=0, bytes_accessed=bytes_accessed),
    )(xT, wT, b2d)

    # (Cout, NM) -> (N, Cout, Ho, Wo).  Slice is a no-op when nm_pad == nm.
    y2d = out if nm_pad == nm else out[:, :nm]
    y = y2d.reshape(cout, n, ho, wo)
    return jnp.transpose(y, (1, 0, 2, 3))


def _reference_forward(x_nchw, weight, bias, noise_nchw, *, stride):
    """Pure-JAX reference (XLA conv) for a correctness cross-check."""
    mask = (noise_nchw > -0.1).astype(x_nchw.dtype)
    x_noisy = x_nchw * mask
    y = jax.lax.conv_general_dilated(
        x_noisy, weight, window_strides=(stride, stride),
        padding=((1, 1), (1, 1)),
        dimension_numbers=("NCHW", "OIHW", "NCHW"))
    y = y + bias.reshape(1, -1, 1, 1)
    return jnp.maximum(y, 0.0)


if __name__ == "__main__":
    # Small shapes consistent with the module: batch=2, Cin=4, Cout=8, 16x16,
    # stride=2 (typical downsampling DAE layer).
    N, CIN, COUT, H, W, STRIDE = 2, 4, 8, 16, 16, 2

    key = jax.random.PRNGKey(0)
    k_w, k_b, k_x, k_n = jax.random.split(key, 4)

    # Deterministic PyTorch-like Conv2d init: U(-1/sqrt(fan_in), 1/sqrt(fan_in)).
    fan_in = CIN * 3 * 3
    bound = 1.0 / (fan_in ** 0.5)
    weight = jax.random.uniform(k_w, (COUT, CIN, 3, 3), jnp.float32,
                                minval=-bound, maxval=bound)
    bias = jax.random.uniform(k_b, (COUT,), jnp.float32,
                              minval=-bound, maxval=bound)

    x = jax.random.normal(k_x, (N, CIN, H, W), jnp.float32)
    # Matches x.data.new(x.size()).normal_(0, 0.1): gaussian with std 0.1.
    noise = 0.1 * jax.random.normal(k_n, (N, CIN, H, W), jnp.float32)

    y = dae_forward(x, weight, bias, noise, stride=STRIDE)
    y = jax.block_until_ready(y)

    ho = (H + 2 - 3) // STRIDE + 1
    wo = (W + 2 - 3) // STRIDE + 1
    assert y.shape == (N, COUT, ho, wo), y.shape
    assert y.dtype == x.dtype, y.dtype

    y_ref = _reference_forward(x, weight, bias, noise, stride=STRIDE)
    # bf16 MXU operands (f32 accumulation, f32 bias) vs f32 XLA reference ->
    # allow a little bf16 rounding slack.
    assert jnp.allclose(y, y_ref, rtol=2e-2, atol=3e-2), (
        float(jnp.max(jnp.abs(y - y_ref))))

    print("KERNEL_OK")
</pallas_src>

<mosaic_0001>
module attributes {stable_mosaic.version = 11 : i64} {
  func.func @_dae_gemm_kernel(%arg0: i32, %arg1: memref<36x128xbf16, #tpu.memory_space<vmem>>, %arg2: memref<8x36xbf16, #tpu.memory_space<vmem>>, %arg3: memref<8x1xf32, #tpu.memory_space<vmem>>, %arg4: memref<8x128xf32, #tpu.memory_space<vmem>>) attributes {dimension_semantics = [#tpu.dimension_semantics<parallel>], iteration_bounds = array<i64: 1>, scalar_prefetch = 0 : i64, scratch_operands = 0 : i64, tpu.core_type = #tpu.core_type<tc>, window_params = [{transform_indices = @transform_0, window_bounds = array<i64: 36, 128>}, {pipeline_mode = #tpu.pipeline_mode<synchronous>, transform_indices = @transform_1, window_bounds = array<i64: 8, 36>}, {pipeline_mode = #tpu.pipeline_mode<synchronous>, transform_indices = @transform_2, window_bounds = array<i64: 8, 1>}, {transform_indices = @transform_3, window_bounds = array<i64: 8, 128>}]} {
    %c0 = arith.constant 0 : index
    %c0_0 = arith.constant 0 : index
    %0 = vector.load %arg2[%c0, %c0_0] : memref<8x36xbf16, #tpu.memory_space<vmem>>, vector<8x36xbf16>
    %c0_1 = arith.constant 0 : index
    %c0_2 = arith.constant 0 : index
    %1 = vector.load %arg1[%c0_1, %c0_2] : memref<36x128xbf16, #tpu.memory_space<vmem>>, vector<36x128xbf16>
    %cst = arith.constant dense<0.000000e+00> : vector<8x128xf32>
    %2 = tpu.matmul %0, %1, %cst {dimension_numbers = #tpu.dot_dimension_numbers<[1], [0], [0], [1], [0, 0, 1, 1], [], []>} : vector<8x36xbf16>, vector<36x128xbf16>, vector<8x128xf32> -> vector<8x128xf32>
    %c0_3 = arith.constant 0 : index
    %c0_4 = arith.constant 0 : index
    %3 = vector.load %arg3[%c0_3, %c0_4] : memref<8x1xf32, #tpu.memory_space<vmem>>, vector<8x1xf32>
    %4 = vector.broadcast %3 : vector<8x1xf32> to vector<8x128xf32>
    %5 = arith.addf %2, %4 : vector<8x128xf32>
    %cst_5 = arith.constant 0.000000e+00 : f32
    %6 = vector.broadcast %cst_5 : f32 to vector<8x128xf32>
    %7 = arith.maximumf %5, %6 : vector<8x128xf32>
    %c0_6 = arith.constant 0 : index
    %c0_7 = arith.constant 0 : index
    %8 = vector.load %arg4[%c0_6, %c0_7] : memref<8x128xf32, #tpu.memory_space<vmem>>, vector<8x128xf32>
    tpu.vector_store %arg4[%c0_6, %c0_7], %7 {strides = array<i32>} : memref<8x128xf32, #tpu.memory_space<vmem>>, vector<8x128xf32>,
    return
  }
  func.func @transform_0(%arg0: i32) -> (i32, i32) {
    %c0_i32 = arith.constant 0 : i32
    %c0_i32_0 = arith.constant 0 : i32
    return %c0_i32, %arg0 : i32, i32
  }
  func.func @transform_1(%arg0: i32) -> (i32, i32) {
    %c0_i32 = arith.constant 0 : i32
    %c0_i32_0 = arith.constant 0 : i32
    %c0_i32_1 = arith.constant 0 : i32
    return %c0_i32, %c0_i32_0 : i32, i32
  }
  func.func @transform_2(%arg0: i32) -> (i32, i32) {
    %c0_i32 = arith.constant 0 : i32
    %c0_i32_0 = arith.constant 0 : i32
    %c0_i32_1 = arith.constant 0 : i32
    return %c0_i32, %c0_i32_0 : i32, i32
  }
  func.func @transform_3(%arg0: i32) -> (i32, i32) {
    %c0_i32 = arith.constant 0 : i32
    %c0_i32_0 = arith.constant 0 : i32
    return %c0_i32, %arg0 : i32, i32
  }
}

</mosaic_0001>

<llo_original>
// kernel: tpu_custom_call.1
$region0: #{tpu_custom_call.1}
  #allocation0 [shape = 'u32[]', space=smem, size = 0x4, offset = 0x4, fixed_abs, tag = 'smem constant byte address 0x4 - core index']
  #allocation1 [shape = 'u32[144,128]{1,0:T(1,128)}', space=vmem, size = 0x12000, scoped, tag = 'internal scratch']
  %s0 = inlined_call_operand.hbm [shape: bf16[36,128], index: 0, kind: input, shape index: {}]
  %s1 = inlined_call_operand.vmem [shape: bf16[8,36], index: 1, kind: input, shape index: {}]
  %s2 = inlined_call_operand.vmem [shape: f32[8,1], index: 2, kind: input, shape index: {}]
  %s3 = inlined_call_operand.hbm [shape: f32[8,128], index: 3, kind: output, shape index: {}]
  %s4 = sld [smem:[#allocation0]]
  $region26: #{tpu_custom_call.1} parent=0
    _
  %s6 = ssub.s32 1, %s4
  %s7 = scalar_select 0, %s6, %s4
  $region1: #{tpu_custom_call.1} parent=0
    #allocation2 [shape = 'u8[10240]{0}', space=vmem, size = 0x2800, scoped, tag = 'input window, operand 0, single buffered']
    #allocation3 [shape = 's32[1]{0}', space=sflag, size = 0x4, scoped, tag = 'scoped memory for tpu_custom_call.1']
    #allocation4 [shape = 's32[1]{0}', space=sflag, size = 0x4, scoped, tag = 'scoped memory for tpu_custom_call.1']
    #allocation5 [shape = 'u8[4096]{0}', space=vmem, size = 0x1000, scoped, tag = 'output window, operand 0, single buffered']
    %8 = vsyncpa [#allocation3], 0
    %9 = vsyncpa [#allocation4], 0
    // Predicated region
    $region2: #{tpu_custom_call.1} parent=1 // pred_check
      _
    $region3: #{tpu_custom_call.1} parent=1 // pred_check_branch
      %11 = sbr.rel (0) target = $region5
    $region4: #{tpu_custom_call.1} parent=1 // pred_region
      %s13 = ssub.s32 320, 320
      %14 = vsyncadd [#allocation3], %s13
      %s15 = sshll.u32 [#allocation2], 4
      %s16 = int_to_ptr.vmem [resolvable:$true] %s15
      %21 = dma.hbm_to_vmem [thread:$0]  %s0, 320, %s16, [#allocation3], 64, 64, 4
    $region5: #{tpu_custom_call.1} parent=1 // pred_fallthru
      _
    // Predicated region
    $region6: #{tpu_custom_call.1} parent=1 // pred_check
      _
    $region7: #{tpu_custom_call.1} parent=1 // pred_check_branch
      %23 = sbr.rel (0) target = $region9
    $region8: #{tpu_custom_call.1} parent=1 // pred_region
      _
    $region9: #{tpu_custom_call.1} parent=1 // pred_fallthru
      _
    // Predicated region
    $region10: #{tpu_custom_call.1} parent=1 // pred_check
      _
    $region11: #{tpu_custom_call.1} parent=1 // pred_check_branch
      %25 = sbr.rel (0) target = $region13
    $region12: #{tpu_custom_call.1} parent=1 // pred_region
      _
    $region13: #{tpu_custom_call.1} parent=1 // pred_fallthru
      _
    // Predicated region
    $region14: #{tpu_custom_call.1} parent=1 // pred_check
      _
    $region15: #{tpu_custom_call.1} parent=1 // pred_check_branch
      %27 = sbr.rel (0) target = $region17
    $region16: #{tpu_custom_call.1} parent=1 // pred_region
      %28 = dma.done [#allocation3], 320
    $region17: #{tpu_custom_call.1} parent=1 // pred_fallthru
      _
    %v30 = vld [vmem:[%s1] sm:$0xf]
    %v31 = vld [vmem:[#allocation2] sm:$0xf]
    %v32 = vld [vmem:[#allocation2 + $0x4] sm:$0xf]
    %v33 = vld [vmem:[#allocation2 + $0x8] sm:$0xf]
    %v34 = vld [vmem:[#allocation2 + $0xc] sm:$0xf]
    %v35 = vld [vmem:[#allocation2 + $0x10] sm:$0x3]
    %v36 = vld [vmem:[%s2] sm:$0xff]
    %38 = vset.pattern.permute.xlu0 0
    %39 = vperm.xlu0 %38, %v36
    %v40 = vpop.permute.xlu0 %39
    %v47 = vunpack.c.l.b16 %v31
    %v48 = vunpack.c.l.b16 %v32
    %v49 = vunpack.c.l.b16 %v33
    %v50 = vunpack.c.l.b16 %v34
    %v51 = vunpack.c.l.b16 %v35
    %v52 = vpack.c.b16 %v48, %v47
    %v53 = vpack.c.b16 %v50, %v49
    %v54 = vpack.c.b16 %v51, %v51
    %vm57 = vcmask 293888
    %v59 = vsel %vm57, %v30, 0
    %vm61 = vcmask 1041408
    %v63 = vsel %vm61, %v54, 0
    %65 = vmatprep.subr.bf16.mxu0 0
    %66 = vmatpush1.bf16.msra.mxu0 0
    %67 = vmatprep.subr.bf16.mxu0 0
    %68 = vmatpush1.bf16.msra.mxu0 0
    %69 = vmatprep.subr.bf16.mxu0 0
    %70 = vmatpush1.bf16.msra.mxu0 0
    %71 = vmatprep.subr.bf16.mxu0 0
    %72 = vmatpush1.bf16.msra.mxu0 0
    %73 = vmatprep.subr.bf16.mxu0 0
    %74 = vmatpush1.bf16.msra.mxu0 0
    %75 = vmatprep.subr.bf16.mxu0 0
    %76 = vmatpush1.bf16.msra.mxu0 %v63
    %77 = vmatprep.subr.bf16.mxu0 0
    %78 = vmatpush1.bf16.msra.mxu0 %v53
    %79 = vmatprep.subr.bf16.mxu0 0
    %80 = vmatpush1.bf16.msra.mxu0 %v52
    %81 = vmatprep.subr.bf16.mxu0 0
    %82 = vmatpush2.bf16.msra.mxu0 0
    %83 = vmatprep.subr.bf16.mxu0 0
    %84 = vmatpush2.bf16.msra.mxu0 0
    %85 = vmatprep.subr.bf16.mxu0 0
    %86 = vmatpush2.bf16.msra.mxu0 0
    %87 = vmatprep.subr.bf16.mxu0 0
    %88 = vmatpush2.bf16.msra.mxu0 0
    %89 = vmatprep.subr.bf16.mxu0 0
    %90 = vmatpush2.bf16.msra.mxu0 0
    %91 = vmatprep.subr.bf16.mxu0 0
    %92 = vmatpush2.bf16.msra.mxu0 0
    %93 = vmatprep.subr.bf16.mxu0 0
    %94 = vmatpush2.bf16.msra.mxu0 0
    %95 = vmatprep.subr.bf16.mxu0 0
    %96 = vmatpush2.bf16.msra.mxu0 0
    %97 = vmatprep.mubr.bf16.mxu0 0
    %98 = vmatmul.mubr.bf16.gmra.mxu0 %v59
    %v99 = vpop.f32.mrf.mxu0
    %v100 = vadd.f32 %v40, %v99
    %v101 = vpop.f32.mrf.mxu0
    %v102 = vpop.f32.mrf.mxu0
    %v103 = vpop.f32.mrf.mxu0
    %104 = vdwg.mxu0
    %v105 = vmax.f32 %v100, 0.0
    %106 = vst [vmem:[#allocation5] sm:$0xff] %v105
    // Predicated region
    $region18: #{tpu_custom_call.1} parent=1 // pred_check
      _
    $region19: #{tpu_custom_call.1} parent=1 // pred_check_branch
      %108 = sbr.rel (0) target = $region21
    $region20: #{tpu_custom_call.1} parent=1 // pred_region
      %s110 = ssub.s32 128, 128
      %111 = vsyncadd [#allocation4], %s110
      %s113 = sshll.u32 [#allocation5], 4
      %s114 = int_to_ptr.vmem [resolvable:$true] %s113
      %116 = dma.vmem_to_hbm [thread:$0]  %s114, 128, %s3, [#allocation4]
    $region21: #{tpu_custom_call.1} parent=1 // pred_fallthru
      _
    // Predicated region
    $region22: #{tpu_custom_call.1} parent=1 // pred_check
      _
    $region23: #{tpu_custom_call.1} parent=1 // pred_check_branch
      %118 = sbr.rel (0) target = $region25
    $region24: #{tpu_custom_call.1} parent=1 // pred_region
      %119 = dma.done [#allocation4], 128
    $region25: #{tpu_custom_call.1} parent=1 // pred_fallthru
      _
    %120 = vsyncpa [#allocation3], 1
    %121 = vsyncpa [#allocation4], 1

</llo_original>
